<compile_context>
chip_gen: v6e
topology: v6e:2x2x1
jax: 0.10.0
libtpu: 0.0.40
codegen_flags: <defaults>
</compile_context>

<pallas_src>
import functools
import jax
import jax.numpy as jnp
from jax.experimental import pallas as pl
from jax.experimental.pallas import tpu as pltpu


def _yolo_kernel(pred_ref, offs_ref, scale_ref, out_ref):
    # pred_ref : (TB, A, C, TG) raw conv outputs, channel-major, lane axis = grid cell
    # offs_ref : (2, TG)  row 0 = x offset (cell % g), row 1 = y offset (cell // g)
    # scale_ref: (A, C, 1) per-(anchor, attr) scale: [stride, stride, aw, ah, 1, ...]
    # out_ref  : (TB, A, C, TG) decoded boxes (pixels) + objectness + class probs
    p = pred_ref[...]                                         # single full-block load

    attr = jax.lax.broadcasted_iota(jnp.int32, p.shape, 2)    # attribute index (sublane iota)
    is_wh = jnp.logical_and(attr >= 2, attr < 4)

    # sigmoid for x/y/conf/cls rows, exp for w/h rows (select is a cheap VPU vsel;
    # both transcendentals go to the EUP slot which is free in this mem-bound kernel).
    act = jnp.where(is_wh, jnp.exp(p), jax.nn.sigmoid(p))

    offs = offs_ref[...]                                      # (2, TG), grid-cell units
    xb = offs[0][None, None, None, :]                         # (1, 1, 1, TG)
    yb = offs[1][None, None, None, :]
    bias = jnp.where(attr == 0, xb, jnp.where(attr == 1, yb, 0.0))

    scale = scale_ref[...][None, :, :, :]                     # (1, A, C, 1)
    # x/y: (sigmoid + offset) * stride  (same fp order as torch)
    # w/h: exp * anchor_pixels          (stride folded into the table)
    # conf/cls: (sigmoid + 0) * 1
    out_ref[...] = (act + bias) * scale                       # single full unmasked store


def yolo_layer_forward(x, anchors, num_classes, image_dim):
    """Inference forward of YOLOLayer. x: (bs, A*(5+nc), g, g) float32 (NCHW)."""
    anchors = jnp.asarray(anchors, dtype=jnp.float32)         # (A, 2) original-pixel anchors
    A = anchors.shape[0]
    C = 5 + num_classes
    bs, ch, g, g2 = x.shape
    assert g == g2 and ch == A * C
    stride = float(image_dim) / float(g)
    gg = g * g

    # Free reshape (channel index factors as a*C + attr): no data movement.
    pred = x.reshape(bs, A, C, gg).astype(jnp.float32)

    # Compact per-cell offsets (2, gg) in grid-cell units.
    xo = jnp.tile(jnp.arange(g, dtype=jnp.float32), g)        # cell -> j = cell % g
    yo = jnp.repeat(jnp.arange(g, dtype=jnp.float32), g)      # cell -> i = cell // g
    offs = jnp.stack([xo, yo], axis=0)                        # (2, gg)

    # Per-(anchor, attr) scale table. torch computes exp(w) * (anchor_w/stride)
    # and later multiplies by stride == exp(w) * anchor_w (pixels) — folded here.
    scale = jnp.concatenate(
        [jnp.full((A, 2), stride, dtype=jnp.float32),         # x, y -> * stride
         anchors,                                             # w, h -> * anchor pixels
         jnp.ones((A, 1 + num_classes), dtype=jnp.float32)],  # conf, cls -> * 1
        axis=1).reshape(A, C, 1)

    # Block sizes: at test shapes the whole problem is one block (grid=(1,1)).
    # For production sizes, batch tiles in chunks of 8 and the lane axis (g*g)
    # is capped to keep the double-buffered VMEM footprint modest.
    TB = bs if bs <= 8 else (8 if bs % 8 == 0 else bs)
    if gg % 128 == 0:
        TG = gg
        while TG > 2048 and TG % 256 == 0:
            TG //= 2
    else:
        TG = gg  # full-extent lane block is legal even when not a multiple of 128

    out = pl.pallas_call(
        _yolo_kernel,
        out_shape=jax.ShapeDtypeStruct((bs, A, C, gg), jnp.float32),
        grid=(bs // TB, gg // TG),
        in_specs=[
            pl.BlockSpec((TB, A, C, TG), lambda b, t: (b, 0, 0, t)),
            pl.BlockSpec((2, TG), lambda b, t: (0, t)),
            pl.BlockSpec((A, C, 1), lambda b, t: (0, 0, 0)),
        ],
        out_specs=pl.BlockSpec((TB, A, C, TG), lambda b, t: (b, 0, 0, t)),
        compiler_params=pltpu.CompilerParams(
            dimension_semantics=("parallel", "parallel")),
    )(pred, offs, scale)

    # Single post-kernel XLA transpose to the torch output layout:
    # out[b, a, attr, cell] -> output[b, cell*A + a, attr]
    return jnp.transpose(out, (0, 3, 1, 2)).reshape(bs, gg * A, C)


def _reference(x, anchors, num_classes, image_dim):
    """Pure-JAX reference of the same forward (mirrors the torch code exactly)."""
    anchors = jnp.asarray(anchors, dtype=jnp.float32)
    A = anchors.shape[0]
    C = 5 + num_classes
    bs, ch, g, _ = x.shape
    stride = float(image_dim) / float(g)
    N = g * g * A
    pred = jnp.transpose(x.reshape(bs, C * A, g * g), (0, 2, 1)).reshape(bs, N, C)
    sx = jax.nn.sigmoid(pred[:, :, 0])
    sy = jax.nn.sigmoid(pred[:, :, 1])
    w = pred[:, :, 2]
    h = pred[:, :, 3]
    conf = jax.nn.sigmoid(pred[:, :, 4])
    cls_ = jax.nn.sigmoid(pred[:, :, 5:])
    xo = jnp.repeat(jnp.tile(jnp.arange(g, dtype=jnp.float32), g), A)
    yo = jnp.repeat(jnp.repeat(jnp.arange(g, dtype=jnp.float32), g), A)
    aw = jnp.tile(anchors[:, 0] / stride, g * g)
    ah = jnp.tile(anchors[:, 1] / stride, g * g)
    bx = (sx + xo) * stride
    by = (sy + yo) * stride
    bw = jnp.exp(w) * aw * stride
    bh = jnp.exp(h) * ah * stride
    return jnp.concatenate(
        [bx[..., None], by[..., None], bw[..., None], bh[..., None],
         conf[..., None], cls_], axis=-1)


if __name__ == "__main__":
    # Small, deterministic config consistent with the module:
    anchors = [(10.0, 13.0), (16.0, 30.0), (33.0, 23.0)]   # 3 anchors
    num_classes = 4                                        # bbox_attrs = 9
    image_dim = 416
    bs, g = 2, 16
    A = len(anchors)
    C = 5 + num_classes

    key = jax.random.PRNGKey(0)
    x = jax.random.normal(key, (bs, A * C, g, g), dtype=jnp.float32)

    fwd = jax.jit(functools.partial(
        yolo_layer_forward, anchors=anchors, num_classes=num_classes,
        image_dim=image_dim))
    out = fwd(x)
    out = jax.block_until_ready(out)

    ref = _reference(x, anchors, num_classes, image_dim)
    assert out.shape == (bs, g * g * A, C), out.shape
    assert jnp.allclose(out, ref, atol=1e-4, rtol=1e-5), "mismatch vs reference"
    print("KERNEL_OK")
</pallas_src>

<mosaic_0001>
module attributes {stable_mosaic.version = 11 : i64} {
  func.func @_yolo_kernel(%arg0: i32, %arg1: i32, %arg2: memref<2x3x9x256xf32, #tpu.memory_space<vmem>>, %arg3: memref<2x256xf32, #tpu.memory_space<vmem>>, %arg4: memref<3x9x1xf32, #tpu.memory_space<vmem>>, %arg5: memref<2x3x9x256xf32, #tpu.memory_space<vmem>>) attributes {dimension_semantics = [#tpu.dimension_semantics<parallel>, #tpu.dimension_semantics<parallel>], iteration_bounds = array<i64: 1, 1>, scalar_prefetch = 0 : i64, scratch_operands = 0 : i64, tpu.core_type = #tpu.core_type<tc>, window_params = [{transform_indices = @transform_0, window_bounds = array<i64: 2, 3, 9, 256>}, {transform_indices = @transform_1, window_bounds = array<i64: 2, 256>}, {pipeline_mode = #tpu.pipeline_mode<synchronous>, transform_indices = @transform_2, window_bounds = array<i64: 3, 9, 1>}, {transform_indices = @transform_3, window_bounds = array<i64: 2, 3, 9, 256>}]} {
    %c0 = arith.constant 0 : index
    %c0_0 = arith.constant 0 : index
    %c0_1 = arith.constant 0 : index
    %c0_2 = arith.constant 0 : index
    %0 = vector.load %arg2[%c0, %c0_0, %c0_1, %c0_2] : memref<2x3x9x256xf32, #tpu.memory_space<vmem>>, vector<2x3x9x256xf32>
    %1 = tpu.iota {dimensions = array<i32: 2>} : vector<2x3x9x256xi32>
    %c2_i32 = arith.constant 2 : i32
    %2 = vector.broadcast %c2_i32 : i32 to vector<2x3x9x256xi32>
    %3 = arith.cmpi sge, %1, %2 : vector<2x3x9x256xi32>
    %c4_i32 = arith.constant 4 : i32
    %4 = vector.broadcast %c4_i32 : i32 to vector<2x3x9x256xi32>
    %5 = arith.cmpi slt, %1, %4 : vector<2x3x9x256xi32>
    %6 = arith.andi %3, %5 : vector<2x3x9x256xi1>
    %7 = math.exp %0 : vector<2x3x9x256xf32>
    %8 = arith.negf %0 : vector<2x3x9x256xf32>
    %9 = math.exp %8 : vector<2x3x9x256xf32>
    %cst = arith.constant 1.000000e+00 : f32
    %10 = vector.broadcast %cst : f32 to vector<2x3x9x256xf32>
    %11 = arith.addf %10, %9 : vector<2x3x9x256xf32>
    %12 = arith.divf %10, %11 : vector<2x3x9x256xf32>
    %13 = arith.select %6, %7, %12 : vector<2x3x9x256xi1>, vector<2x3x9x256xf32>
    %c0_3 = arith.constant 0 : index
    %c0_4 = arith.constant 0 : index
    %14 = vector.load %arg3[%c0_3, %c0_4] : memref<2x256xf32, #tpu.memory_space<vmem>>, vector<2x256xf32>
    %15 = vector.extract_strided_slice %14 {offsets = [0, 0], sizes = [1, 256], strides = [1, 1]} : vector<2x256xf32> to vector<1x256xf32>
    %16 = vector.shape_cast %15 : vector<1x256xf32> to vector<256xf32>
    %17 = vector.shape_cast %16 : vector<256xf32> to vector<1x1x1x256xf32>
    %18 = vector.extract_strided_slice %14 {offsets = [1, 0], sizes = [1, 256], strides = [1, 1]} : vector<2x256xf32> to vector<1x256xf32>
    %19 = vector.shape_cast %18 : vector<1x256xf32> to vector<256xf32>
    %20 = vector.shape_cast %19 : vector<256xf32> to vector<1x1x1x256xf32>
    %c0_i32 = arith.constant 0 : i32
    %21 = vector.broadcast %c0_i32 : i32 to vector<2x3x9x256xi32>
    %22 = arith.cmpi eq, %1, %21 : vector<2x3x9x256xi32>
    %c1_i32 = arith.constant 1 : i32
    %23 = vector.broadcast %c1_i32 : i32 to vector<2x3x9x256xi32>
    %24 = arith.cmpi eq, %1, %23 : vector<2x3x9x256xi32>
    %cst_5 = arith.constant 0.000000e+00 : f32
    %25 = vector.shape_cast %20 : vector<1x1x1x256xf32> to vector<1x1x1x256xf32>
    %26 = vector.broadcast %25 : vector<1x1x1x256xf32> to vector<2x3x9x256xf32>
    %27 = vector.broadcast %cst_5 : f32 to vector<2x3x9x256xf32>
    %28 = arith.select %24, %26, %27 : vector<2x3x9x256xi1>, vector<2x3x9x256xf32>
    %29 = vector.shape_cast %17 : vector<1x1x1x256xf32> to vector<1x1x1x256xf32>
    %30 = vector.broadcast %29 : vector<1x1x1x256xf32> to vector<2x3x9x256xf32>
    %31 = arith.select %22, %30, %28 : vector<2x3x9x256xi1>, vector<2x3x9x256xf32>
    %c0_6 = arith.constant 0 : index
    %c0_7 = arith.constant 0 : index
    %c0_8 = arith.constant 0 : index
    %32 = vector.load %arg4[%c0_6, %c0_7, %c0_8] : memref<3x9x1xf32, #tpu.memory_space<vmem>>, vector<3x9x1xf32>
    %33 = vector.shape_cast %32 : vector<3x9x1xf32> to vector<1x3x9x1xf32>
    %34 = arith.addf %13, %31 : vector<2x3x9x256xf32>
    %35 = vector.broadcast %33 : vector<1x3x9x1xf32> to vector<2x3x9x256xf32>
    %36 = arith.mulf %34, %35 : vector<2x3x9x256xf32>
    %c0_9 = arith.constant 0 : index
    %c0_10 = arith.constant 0 : index
    %c0_11 = arith.constant 0 : index
    %c0_12 = arith.constant 0 : index
    %37 = vector.load %arg5[%c0_9, %c0_10, %c0_11, %c0_12] : memref<2x3x9x256xf32, #tpu.memory_space<vmem>>, vector<2x3x9x256xf32>
    tpu.vector_store %arg5[%c0_9, %c0_10, %c0_11, %c0_12], %36 {strides = array<i32>} : memref<2x3x9x256xf32, #tpu.memory_space<vmem>>, vector<2x3x9x256xf32>,
    return
  }
  func.func @transform_0(%arg0: i32, %arg1: i32) -> (i32, i32, i32, i32) {
    %c0_i32 = arith.constant 0 : i32
    %c0_i32_0 = arith.constant 0 : i32
    %c0_i32_1 = arith.constant 0 : i32
    return %arg0, %c0_i32, %c0_i32_0, %arg1 : i32, i32, i32, i32
  }
  func.func @transform_1(%arg0: i32, %arg1: i32) -> (i32, i32) {
    %c0_i32 = arith.constant 0 : i32
    %c0_i32_0 = arith.constant 0 : i32
    return %c0_i32, %arg1 : i32, i32
  }
  func.func @transform_2(%arg0: i32, %arg1: i32) -> (i32, i32, i32) {
    %c0_i32 = arith.constant 0 : i32
    %c0_i32_0 = arith.constant 0 : i32
    %c0_i32_1 = arith.constant 0 : i32
    %c0_i32_2 = arith.constant 0 : i32
    return %c0_i32, %c0_i32_0, %c0_i32_1 : i32, i32, i32
  }
  func.func @transform_3(%arg0: i32, %arg1: i32) -> (i32, i32, i32, i32) {
    %c0_i32 = arith.constant 0 : i32
    %c0_i32_0 = arith.constant 0 : i32
    %c0_i32_1 = arith.constant 0 : i32
    return %arg0, %c0_i32, %c0_i32_0, %arg1 : i32, i32, i32, i32
  }
}

</mosaic_0001>

<llo_original>
// kernel: tile.9
$region0: #{tile.9}
  %s0 = inlined_call_operand.vmem [shape: f32[16,16], index: 0, kind: input, shape index: {}]
  %s1 = inlined_call_operand.vmem [shape: f32[1,256], index: 1, kind: output, shape index: {}]
  $region1: #{tile.9} parent=0
    #allocation0 [shape = 'u8[8192]{0}', space=vmem, size = 0x2000, scoped, tag = 'scoped mem for output reshape']
    %s2 = smov 3
    %v3 = vld [vmem:[%s0] ss:$8 sm:%s2]
    %vm4 = vcmask 130048
    %5 = vst.msk [vmem:[#allocation0] ss:$8 sm:$0x3] %vm4, %v3
    %s6 = scalar_lea.vmem %s0, 7
    %s7 = smov 3
    %v8 = vld [vmem:[%s6] ss:$8 sm:%s7]
    %9 = vrot.lane.b32.xlu0 %v8, 112
    %v10 = vpop.permute.xlu0 %9
    %vm11 = vcmask 1048448
    %12 = vst.msk [vmem:[#allocation0] ss:$8 sm:$0x3] %vm11, %v10
    %s13 = scalar_lea.vmem %s0, 6
    %s14 = smov 3
    %v15 = vld [vmem:[%s13] ss:$8 sm:%s14]
    %16 = vrot.lane.b32.xlu0 %v15, 96
    %v17 = vpop.permute.xlu0 %16
    %vm18 = vcmask 917248
    %19 = vst.msk [vmem:[#allocation0] ss:$8 sm:$0x3] %vm18, %v17
    %s20 = scalar_lea.vmem %s0, 5
    %s21 = smov 3
    %v22 = vld [vmem:[%s20] ss:$8 sm:%s21]
    %23 = vrot.lane.b32.xlu0 %v22, 80
    %v24 = vpop.permute.xlu0 %23
    %vm25 = vcmask 786048
    %26 = vst.msk [vmem:[#allocation0] ss:$8 sm:$0x3] %vm25, %v24
    %s27 = scalar_lea.vmem %s0, 4
    %s28 = smov 3
    %v29 = vld [vmem:[%s27] ss:$8 sm:%s28]
    %30 = vrot.lane.b32.xlu0 %v29, 64
    %v31 = vpop.permute.xlu0 %30
    %vm32 = vcmask 654848
    %33 = vst.msk [vmem:[#allocation0] ss:$8 sm:$0x3] %vm32, %v31
    %s34 = scalar_lea.vmem %s0, 3
    %s35 = smov 3
    %v36 = vld [vmem:[%s34] ss:$8 sm:%s35]
    %37 = vrot.lane.b32.xlu0 %v36, 48
    %v38 = vpop.permute.xlu0 %37
    %vm39 = vcmask 523648
    %40 = vst.msk [vmem:[#allocation0] ss:$8 sm:$0x3] %vm39, %v38
    %s41 = scalar_lea.vmem %s0, 2
    %s42 = smov 3
    %v43 = vld [vmem:[%s41] ss:$8 sm:%s42]
    %44 = vrot.lane.b32.xlu0 %v43, 32
    %v45 = vpop.permute.xlu0 %44
    %vm46 = vcmask 392448
    %47 = vst.msk [vmem:[#allocation0] ss:$8 sm:$0x3] %vm46, %v45
    %s48 = scalar_lea.vmem %s0, 1
    %s49 = smov 3
    %v50 = vld [vmem:[%s48] ss:$8 sm:%s49]
    %51 = vrot.lane.b32.xlu0 %v50, 16
    %v52 = vpop.permute.xlu0 %51
    %vm53 = vcmask 261248
    %54 = vst.msk [vmem:[#allocation0] ss:$8 sm:$0x3] %vm53, %v52
    %s56 = sshll.u32 1, 1
    %s57 = ssub.s32 %s56, 1
    %v59 = vld [vmem:[#allocation0] sm:%s57]
    %s60 = sshll.u32 1, 1
    %s61 = ssub.s32 %s60, 1
    %62 = vst [vmem:[%s1] sm:%s61] %v59
    %s63 = scalar_lea.vmem [#allocation0], 8
    %v64 = vld [vmem:[%s63] sm:%s57]
    %s65 = sshll.u32 1, 1
    %s66 = ssub.s32 %s65, 1
    %s67 = scalar_lea.vmem %s1, 1
    %68 = vst [vmem:[%s67] sm:%s66] %v64

// kernel: yolo_layer_forward.1
$region0: #{yolo_layer_forward.1}
  #allocation0 [shape = 'u32[]', space=smem, size = 0x4, offset = 0x4, fixed_abs, tag = 'smem constant byte address 0x4 - core index']
  #allocation1 [shape = 'u32[144,128]{1,0:T(1,128)}', space=vmem, size = 0x12000, scoped, tag = 'internal scratch']
  %s0 = inlined_call_operand.vmem [shape: f32[2,3,9,256], index: 0, kind: input, shape index: {}]
  %s1 = inlined_call_operand.vmem [shape: f32[2,256], index: 1, kind: input, shape index: {}]
  %s2 = inlined_call_operand.vmem [shape: f32[3,9,1], index: 2, kind: input, shape index: {}]
  %s3 = inlined_call_operand.vmem [shape: f32[2,3,9,256], index: 3, kind: output, shape index: {}]
  %s4 = sld [smem:[#allocation0]]
  $region22: #{yolo_layer_forward.1} parent=0
    _
  %s6 = ssub.s32 1, %s4
  %s7 = scalar_select 0, %s6, %s4
  // Predicated region
  $region2: #{yolo_layer_forward.1} parent=0 // pred_check
    _
  $region3: #{yolo_layer_forward.1} parent=0 // pred_check_branch
    %9 = sbr.rel (0) target = $region5
  $region4: #{yolo_layer_forward.1} parent=0 // pred_region
    _
  $region5: #{yolo_layer_forward.1} parent=0 // pred_fallthru
    _
  // Predicated region
  $region6: #{yolo_layer_forward.1} parent=0 // pred_check
    _
  $region7: #{yolo_layer_forward.1} parent=0 // pred_check_branch
    %11 = sbr.rel (0) target = $region9
  $region8: #{yolo_layer_forward.1} parent=0 // pred_region
    _
  $region9: #{yolo_layer_forward.1} parent=0 // pred_fallthru
    _
  // Predicated region
  $region10: #{yolo_layer_forward.1} parent=0 // pred_check
    _
  $region11: #{yolo_layer_forward.1} parent=0 // pred_check_branch
    %13 = sbr.rel (0) target = $region13
  $region12: #{yolo_layer_forward.1} parent=0 // pred_region
    _
  $region13: #{yolo_layer_forward.1} parent=0 // pred_fallthru
    _
  %v14 = vld [vmem:[%s0] sm:$0xff]
  %v15 = vld [vmem:[%s0 + $0x8] sm:$0xff]
  %v16 = vld [vmem:[%s0 + $0x10] sm:$0x1]
  %v17 = vld [vmem:[%s0 + $0x18] sm:$0x1]
  %v18 = vld [vmem:[%s0 + $0x20] sm:$0xff]
  %v19 = vld [vmem:[%s0 + $0x28] sm:$0xff]
  %v20 = vld [vmem:[%s0 + $0x30] sm:$0x1]
  %v21 = vld [vmem:[%s0 + $0x38] sm:$0x1]
  %v22 = vld [vmem:[%s0 + $0x40] sm:$0xff]
  %v23 = vld [vmem:[%s0 + $0x48] sm:$0xff]
  %v24 = vld [vmem:[%s0 + $0x50] sm:$0x1]
  %v25 = vld [vmem:[%s0 + $0x58] sm:$0x1]
  %v26 = vld [vmem:[%s0 + $0x60] sm:$0xff]
  %v27 = vld [vmem:[%s0 + $0x68] sm:$0xff]
  %v28 = vld [vmem:[%s0 + $0x70] sm:$0x1]
  %v29 = vld [vmem:[%s0 + $0x78] sm:$0x1]
  %v30 = vld [vmem:[%s0 + $0x80] sm:$0xff]
  %v31 = vld [vmem:[%s0 + $0x88] sm:$0xff]
  %v32 = vld [vmem:[%s0 + $0x90] sm:$0x1]
  %v33 = vld [vmem:[%s0 + $0x98] sm:$0x1]
  %v34 = vld [vmem:[%s0 + $0xa0] sm:$0xff]
  %v35 = vld [vmem:[%s0 + $0xa8] sm:$0xff]
  %v36 = vld [vmem:[%s0 + $0xb0] sm:$0x1]
  %v37 = vld [vmem:[%s0 + $0xb8] sm:$0x1]
  %v38 = vlaneseq
  %v39 = vshrl.u32 %v38, 7
  %v40 = vadd.s32 %v39, 8
  %vm41 = vcmp.ge.s32.totalorder %v39, 2
  %vm42 = vcmp.ge.s32.totalorder %v40, 2
  %vm43 = vcmp.lt.s32.totalorder %v39, 4
  %vm44 = vcmp.lt.s32.totalorder %v40, 4
  %vm45 = vmand %vm41, %vm43
  %vm46 = vmand %vm42, %vm44
  %v47 = vmul.f32 %v14, 1.442695
  %v48 = vpow.pop %v47
  %v49 = vmul.f32 %v15, 1.442695
  %v50 = vpow.pop %v49
  %v51 = vmul.f32 %v16, 1.442695
  %v52 = vpow.pop %v51
  %v53 = vmul.f32 %v17, 1.442695
  %v54 = vpow.pop %v53
  %v55 = vmul.f32 %v18, 1.442695
  %v56 = vpow.pop %v55
  %v57 = vmul.f32 %v19, 1.442695
  %v58 = vpow.pop %v57
  %v59 = vmul.f32 %v20, 1.442695
  %v60 = vpow.pop %v59
  %v61 = vmul.f32 %v21, 1.442695
  %v62 = vpow.pop %v61
  %v63 = vmul.f32 %v22, 1.442695
  %v64 = vpow.pop %v63
  %v65 = vmul.f32 %v23, 1.442695
  %v66 = vpow.pop %v65
  %v67 = vmul.f32 %v24, 1.442695
  %v68 = vpow.pop %v67
  %v69 = vmul.f32 %v25, 1.442695
  %v70 = vpow.pop %v69
  %v71 = vmul.f32 %v26, 1.442695
  %v72 = vpow.pop %v71
  %v73 = vmul.f32 %v27, 1.442695
  %v74 = vpow.pop %v73
  %v75 = vmul.f32 %v28, 1.442695
  %v76 = vpow.pop %v75
  %v77 = vmul.f32 %v29, 1.442695
  %v78 = vpow.pop %v77
  %v79 = vmul.f32 %v30, 1.442695
  %v80 = vpow.pop %v79
  %v81 = vmul.f32 %v31, 1.442695
  %v82 = vpow.pop %v81
  %v83 = vmul.f32 %v32, 1.442695
  %v84 = vpow.pop %v83
  %v85 = vmul.f32 %v33, 1.442695
  %v86 = vpow.pop %v85
  %v87 = vmul.f32 %v34, 1.442695
  %v88 = vpow.pop %v87
  %v89 = vmul.f32 %v35, 1.442695
  %v90 = vpow.pop %v89
  %v91 = vmul.f32 %v36, 1.442695
  %v92 = vpow.pop %v91
  %v93 = vmul.f32 %v37, 1.442695
  %v94 = vpow.pop %v93
  %v95 = vxor.u32 %v14, 2147483648
  %v96 = vxor.u32 %v15, 2147483648
  %v97 = vxor.u32 %v16, 2147483648
  %v98 = vxor.u32 %v17, 2147483648
  %v99 = vxor.u32 %v18, 2147483648
  %v100 = vxor.u32 %v19, 2147483648
  %v101 = vxor.u32 %v20, 2147483648
  %v102 = vxor.u32 %v21, 2147483648
  %v103 = vxor.u32 %v22, 2147483648
  %v104 = vxor.u32 %v23, 2147483648
  %v105 = vxor.u32 %v24, 2147483648
  %v106 = vxor.u32 %v25, 2147483648
  %v107 = vxor.u32 %v26, 2147483648
  %v108 = vxor.u32 %v27, 2147483648
  %v109 = vxor.u32 %v28, 2147483648
  %v110 = vxor.u32 %v29, 2147483648
  %v111 = vxor.u32 %v30, 2147483648
  %v112 = vxor.u32 %v31, 2147483648
  %v113 = vxor.u32 %v32, 2147483648
  %v114 = vxor.u32 %v33, 2147483648
  %v115 = vxor.u32 %v34, 2147483648
  %v116 = vxor.u32 %v35, 2147483648
  %v117 = vxor.u32 %v36, 2147483648
  %v118 = vxor.u32 %v37, 2147483648
  %v119 = vmul.f32 %v95, 1.442695
  %v120 = vpow.pop %v119
  %v121 = vmul.f32 %v96, 1.442695
  %v122 = vpow.pop %v121
  %v123 = vmul.f32 %v97, 1.442695
  %v124 = vpow.pop %v123
  %v125 = vmul.f32 %v98, 1.442695
  %v126 = vpow.pop %v125
  %v127 = vmul.f32 %v99, 1.442695
  %v128 = vpow.pop %v127
  %v129 = vmul.f32 %v100, 1.442695
  %v130 = vpow.pop %v129
  %v131 = vmul.f32 %v101, 1.442695
  %v132 = vpow.pop %v131
  %v133 = vmul.f32 %v102, 1.442695
  %v134 = vpow.pop %v133
  %v135 = vmul.f32 %v103, 1.442695
  %v136 = vpow.pop %v135
  %v137 = vmul.f32 %v104, 1.442695
  %v138 = vpow.pop %v137
  %v139 = vmul.f32 %v105, 1.442695
  %v140 = vpow.pop %v139
  %v141 = vmul.f32 %v106, 1.442695
  %v142 = vpow.pop %v141
  %v143 = vmul.f32 %v107, 1.442695
  %v144 = vpow.pop %v143
  %v145 = vmul.f32 %v108, 1.442695
  %v146 = vpow.pop %v145
  %v147 = vmul.f32 %v109, 1.442695
  %v148 = vpow.pop %v147
  %v149 = vmul.f32 %v110, 1.442695
  %v150 = vpow.pop %v149
  %v151 = vmul.f32 %v111, 1.442695
  %v152 = vpow.pop %v151
  %v153 = vmul.f32 %v112, 1.442695
  %v154 = vpow.pop %v153
  %v155 = vmul.f32 %v113, 1.442695
  %v156 = vpow.pop %v155
  %v157 = vmul.f32 %v114, 1.442695
  %v158 = vpow.pop %v157
  %v159 = vmul.f32 %v115, 1.442695
  %v160 = vpow.pop %v159
  %v161 = vmul.f32 %v116, 1.442695
  %v162 = vpow.pop %v161
  %v163 = vmul.f32 %v117, 1.442695
  %v164 = vpow.pop %v163
  %v165 = vmul.f32 %v118, 1.442695
  %v166 = vpow.pop %v165
  %v167 = vadd.f32 %v120, 1.0
  %v168 = vadd.f32 %v122, 1.0
  %v169 = vadd.f32 %v124, 1.0
  %v170 = vadd.f32 %v126, 1.0
  %v171 = vadd.f32 %v128, 1.0
  %v172 = vadd.f32 %v130, 1.0
  %v173 = vadd.f32 %v132, 1.0
  %v174 = vadd.f32 %v134, 1.0
  %v175 = vadd.f32 %v136, 1.0
  %v176 = vadd.f32 %v138, 1.0
  %v177 = vadd.f32 %v140, 1.0
  %v178 = vadd.f32 %v142, 1.0
  %v179 = vadd.f32 %v144, 1.0
  %v180 = vadd.f32 %v146, 1.0
  %v181 = vadd.f32 %v148, 1.0
  %v182 = vadd.f32 %v150, 1.0
  %v183 = vadd.f32 %v152, 1.0
  %v184 = vadd.f32 %v154, 1.0
  %v185 = vadd.f32 %v156, 1.0
  %v186 = vadd.f32 %v158, 1.0
  %v187 = vadd.f32 %v160, 1.0
  %v188 = vadd.f32 %v162, 1.0
  %v189 = vadd.f32 %v164, 1.0
  %v190 = vadd.f32 %v166, 1.0
  %v191 = vrcp.pop %v167
  %v192 = vmul.f32 1.0, %v191
  %v193 = vrcp.pop %v168
  %v194 = vmul.f32 1.0, %v193
  %v195 = vrcp.pop %v169
  %v196 = vmul.f32 1.0, %v195
  %v197 = vrcp.pop %v170
  %v198 = vmul.f32 1.0, %v197
  %v199 = vrcp.pop %v171
  %v200 = vmul.f32 1.0, %v199
  %v201 = vrcp.pop %v172
  %v202 = vmul.f32 1.0, %v201
  %v203 = vrcp.pop %v173
  %v204 = vmul.f32 1.0, %v203
  %v205 = vrcp.pop %v174
  %v206 = vmul.f32 1.0, %v205
  %v207 = vrcp.pop %v175
  %v208 = vmul.f32 1.0, %v207
  %v209 = vrcp.pop %v176
  %v210 = vmul.f32 1.0, %v209
  %v211 = vrcp.pop %v177
  %v212 = vmul.f32 1.0, %v211
  %v213 = vrcp.pop %v178
  %v214 = vmul.f32 1.0, %v213
  %v215 = vrcp.pop %v179
  %v216 = vmul.f32 1.0, %v215
  %v217 = vrcp.pop %v180
  %v218 = vmul.f32 1.0, %v217
  %v219 = vrcp.pop %v181
  %v220 = vmul.f32 1.0, %v219
  %v221 = vrcp.pop %v182
  %v222 = vmul.f32 1.0, %v221
  %v223 = vrcp.pop %v183
  %v224 = vmul.f32 1.0, %v223
  %v225 = vrcp.pop %v184
  %v226 = vmul.f32 1.0, %v225
  %v227 = vrcp.pop %v185
  %v228 = vmul.f32 1.0, %v227
  %v229 = vrcp.pop %v186
  %v230 = vmul.f32 1.0, %v229
  %v231 = vrcp.pop %v187
  %v232 = vmul.f32 1.0, %v231
  %v233 = vrcp.pop %v188
  %v234 = vmul.f32 1.0, %v233
  %v235 = vrcp.pop %v189
  %v236 = vmul.f32 1.0, %v235
  %v237 = vrcp.pop %v190
  %v238 = vmul.f32 1.0, %v237
  %v239 = vsel %vm45, %v48, %v192
  %v240 = vsel %vm45, %v50, %v194
  %v241 = vsel %vm46, %v52, %v196
  %v242 = vsel %vm46, %v54, %v198
  %v243 = vsel %vm45, %v56, %v200
  %v244 = vsel %vm45, %v58, %v202
  %v245 = vsel %vm46, %v60, %v204
  %v246 = vsel %vm46, %v62, %v206
  %v247 = vsel %vm45, %v64, %v208
  %v248 = vsel %vm45, %v66, %v210
  %v249 = vsel %vm46, %v68, %v212
  %v250 = vsel %vm46, %v70, %v214
  %v251 = vsel %vm45, %v72, %v216
  %v252 = vsel %vm45, %v74, %v218
  %v253 = vsel %vm46, %v76, %v220
  %v254 = vsel %vm46, %v78, %v222
  %v255 = vsel %vm45, %v80, %v224
  %v256 = vsel %vm45, %v82, %v226
  %v257 = vsel %vm46, %v84, %v228
  %v258 = vsel %vm46, %v86, %v230
  %v259 = vsel %vm45, %v88, %v232
  %v260 = vsel %vm45, %v90, %v234
  %v261 = vsel %vm46, %v92, %v236
  %v262 = vsel %vm46, %v94, %v238
  %v263 = vld [vmem:[%s1] sm:$0xf]
  %vm264 = vcmp.eq.s32.totalorder %v39, 0
  %vm265 = vcmp.eq.s32.totalorder %v40, 0
  %vm266 = vcmp.eq.s32.totalorder %v39, 1
  %vm267 = vcmp.eq.s32.totalorder %v40, 1
  %v269 = vlaneseq
  %v270 = vshrl.u32 %v269, 7
  %v271 = vsub.s32 1, %v270
  %v272 = vrot.slane %v263, %v271
  %v273 = vlaneseq
  %v274 = vshrl.u32 %v273, 7
  %v275 = vsub.s32 3, %v274
  %v276 = vrot.slane %v263, %v275
  %v279 = vlaneseq
  %v280 = vshrl.u32 %v279, 7
  %v281 = vsub.s32 1, %v280
  %v282 = vrot.slane %v272, %v281
  %v283 = vlaneseq
  %v284 = vshrl.u32 %v283, 7
  %v285 = vsub.s32 1, %v284
  %v286 = vrot.slane %v276, %v285
  %v287 = vsel %vm266, %v282, 0.0
  %v288 = vsel %vm266, %v286, 0.0
  %v289 = vsel %vm267, %v282, 0.0
  %v290 = vsel %vm267, %v286, 0.0
  %v291 = vlaneseq
  %v292 = vshrl.u32 %v291, 7
  %v293 = vsub.s32 0, %v292
  %v294 = vrot.slane %v263, %v293
  %v295 = vlaneseq
  %v296 = vshrl.u32 %v295, 7
  %v297 = vsub.s32 2, %v296
  %v298 = vrot.slane %v263, %v297
  %v301 = vlaneseq
  %v302 = vshrl.u32 %v301, 7
  %v303 = vsub.s32 0, %v302
  %v304 = vrot.slane %v294, %v303
  %v305 = vlaneseq
  %v306 = vshrl.u32 %v305, 7
  %v307 = vsub.s32 0, %v306
  %v308 = vrot.slane %v298, %v307
  %v309 = vsel %vm264, %v304, %v287
  %v310 = vsel %vm264, %v308, %v288
  %v311 = vsel %vm265, %v304, %v289
  %v312 = vsel %vm265, %v308, %v290
  %v313 = vld [vmem:[%s2] sm:$0xff]
  %v314 = vld [vmem:[%s2 + $0x8] sm:$0x1]
  %v315 = vld [vmem:[%s2 + $0x10] sm:$0xff]
  %v316 = vld [vmem:[%s2 + $0x18] sm:$0x1]
  %v317 = vld [vmem:[%s2 + $0x20] sm:$0xff]
  %v318 = vld [vmem:[%s2 + $0x28] sm:$0x1]
  %v319 = vadd.f32 %v239, %v309
  %v320 = vadd.f32 %v240, %v310
  %v321 = vadd.f32 %v241, %v311
  %v322 = vadd.f32 %v242, %v312
  %v323 = vadd.f32 %v243, %v309
  %v324 = vadd.f32 %v244, %v310
  %v325 = vadd.f32 %v245, %v311
  %v326 = vadd.f32 %v246, %v312
  %v327 = vadd.f32 %v247, %v309
  %v328 = vadd.f32 %v248, %v310
  %v329 = vadd.f32 %v249, %v311
  %v330 = vadd.f32 %v250, %v312
  %v331 = vadd.f32 %v251, %v309
  %v332 = vadd.f32 %v252, %v310
  %v333 = vadd.f32 %v253, %v311
  %v334 = vadd.f32 %v254, %v312
  %v335 = vadd.f32 %v255, %v309
  %v336 = vadd.f32 %v256, %v310
  %v337 = vadd.f32 %v257, %v311
  %v338 = vadd.f32 %v258, %v312
  %v339 = vadd.f32 %v259, %v309
  %v340 = vadd.f32 %v260, %v310
  %v341 = vadd.f32 %v261, %v311
  %v342 = vadd.f32 %v262, %v312
  %344 = vset.pattern.permute.xlu0 0
  %345 = vperm.xlu0 %344, %v313
  %v346 = vpop.permute.xlu0 %345
  %349 = vset.pattern.permute.xlu0 0
  %350 = vperm.xlu0 %349, %v314
  %v351 = vpop.permute.xlu0 %350
  %354 = vset.pattern.permute.xlu0 0
  %355 = vperm.xlu0 %354, %v315
  %v356 = vpop.permute.xlu0 %355
  %359 = vset.pattern.permute.xlu0 0
  %360 = vperm.xlu0 %359, %v316
  %v361 = vpop.permute.xlu0 %360
  %364 = vset.pattern.permute.xlu0 0
  %365 = vperm.xlu0 %364, %v317
  %v366 = vpop.permute.xlu0 %365
  %369 = vset.pattern.permute.xlu0 0
  %370 = vperm.xlu0 %369, %v318
  %v371 = vpop.permute.xlu0 %370
  %v373 = vmul.f32 %v319, %v346
  %v374 = vmul.f32 %v320, %v346
  %v375 = vmul.f32 %v321, %v351
  %v376 = vmul.f32 %v322, %v351
  %v377 = vmul.f32 %v323, %v356
  %v378 = vmul.f32 %v324, %v356
  %v379 = vmul.f32 %v325, %v361
  %v380 = vmul.f32 %v326, %v361
  %v381 = vmul.f32 %v327, %v366
  %v382 = vmul.f32 %v328, %v366
  %v383 = vmul.f32 %v329, %v371
  %v384 = vmul.f32 %v330, %v371
  %v385 = vmul.f32 %v331, %v346
  %v386 = vmul.f32 %v332, %v346
  %v387 = vmul.f32 %v333, %v351
  %v388 = vmul.f32 %v334, %v351
  %v389 = vmul.f32 %v335, %v356
  %v390 = vmul.f32 %v336, %v356
  %v391 = vmul.f32 %v337, %v361
  %v392 = vmul.f32 %v338, %v361
  %v393 = vmul.f32 %v339, %v366
  %v394 = vmul.f32 %v340, %v366
  %v395 = vmul.f32 %v341, %v371
  %v396 = vmul.f32 %v342, %v371
  %397 = vst [vmem:[%s3] sm:$0xff] %v373
  %398 = vst [vmem:[%s3 + $0x8] sm:$0xff] %v374
  %399 = vst [vmem:[%s3 + $0x10] sm:$0x1] %v375
  %400 = vst [vmem:[%s3 + $0x18] sm:$0x1] %v376
  %401 = vst [vmem:[%s3 + $0x20] sm:$0xff] %v377
  %402 = vst [vmem:[%s3 + $0x28] sm:$0xff] %v378
  %403 = vst [vmem:[%s3 + $0x30] sm:$0x1] %v379
  %404 = vst [vmem:[%s3 + $0x38] sm:$0x1] %v380
  %405 = vst [vmem:[%s3 + $0x40] sm:$0xff] %v381
  %406 = vst [vmem:[%s3 + $0x48] sm:$0xff] %v382
  %407 = vst [vmem:[%s3 + $0x50] sm:$0x1] %v383
  %408 = vst [vmem:[%s3 + $0x58] sm:$0x1] %v384
  %409 = vst [vmem:[%s3 + $0x60] sm:$0xff] %v385
  %410 = vst [vmem:[%s3 + $0x68] sm:$0xff] %v386
  %411 = vst [vmem:[%s3 + $0x70] sm:$0x1] %v387
  %412 = vst [vmem:[%s3 + $0x78] sm:$0x1] %v388
  %413 = vst [vmem:[%s3 + $0x80] sm:$0xff] %v389
  %414 = vst [vmem:[%s3 + $0x88] sm:$0xff] %v390
  %415 = vst [vmem:[%s3 + $0x90] sm:$0x1] %v391
  %416 = vst [vmem:[%s3 + $0x98] sm:$0x1] %v392
  %417 = vst [vmem:[%s3 + $0xa0] sm:$0xff] %v393
  %418 = vst [vmem:[%s3 + $0xa8] sm:$0xff] %v394
  %419 = vst [vmem:[%s3 + $0xb0] sm:$0x1] %v395
  %420 = vst [vmem:[%s3 + $0xb8] sm:$0x1] %v396
  // Predicated region
  $region14: #{yolo_layer_forward.1} parent=0 // pred_check
    _
  $region15: #{yolo_layer_forward.1} parent=0 // pred_check_branch
    %422 = sbr.rel (0) target = $region17
  $region16: #{yolo_layer_forward.1} parent=0 // pred_region
    _
  $region17: #{yolo_layer_forward.1} parent=0 // pred_fallthru
    _
  // Predicated region
  $region18: #{yolo_layer_forward.1} parent=0 // pred_check
    _
  $region19: #{yolo_layer_forward.1} parent=0 // pred_check_branch
    %424 = sbr.rel (0) target = $region21
  $region20: #{yolo_layer_forward.1} parent=0 // pred_region
    _
  $region21: #{yolo_layer_forward.1} parent=0 // pred_fallthru
    _

</llo_original>
